<compile_context>
chip_gen: v7x
topology: tpu7x:2x2x1
jax: 0.10.0
libtpu: 0.0.40
codegen_flags: <defaults>
</compile_context>

<pallas_src>
import math

import jax
import jax.numpy as jnp
from jax.experimental import pallas as pl
from jax.experimental.pallas import tpu as pltpu  # noqa: F401  (TPU backend)

# ---- model config (small, deterministic) ----
BATCH = 2
HIDDEN = 32
NUM_LABELS = 2      # BertOnlyNSPHead: nn.Linear(config.hidden_size, 2)


def nsp_head_kernel(x_ref, w_ref, b_ref, out_ref):
    """(B, H) @ (H, 2) + (1, 2) -> (B, 2); single shot, no transposes."""
    out_ref[...] = (
        jnp.dot(x_ref[...], w_ref[...], preferred_element_type=jnp.float32)
        + b_ref[...]
    )


def prepare_params(weight, bias):
    """One-time parameter prep at load time (NOT in the per-forward path).

    weight: (2, H) PyTorch (out, in) layout  ->  (H, 2)
    bias:   (2,)                              ->  (1, 2)
    """
    w_t = jnp.asarray(weight, jnp.float32).T
    b2d = jnp.asarray(bias, jnp.float32).reshape(1, -1)
    return w_t, b2d


@jax.jit
def nsp_head(pooled_output, w_t, bias2d):
    """pooled_output: (B, H) fp32; w_t: (H, 2) pre-transposed; bias2d: (1, 2)."""
    B, H = pooled_output.shape
    out_dim = w_t.shape[1]

    return pl.pallas_call(
        nsp_head_kernel,
        out_shape=jax.ShapeDtypeStruct((B, out_dim), jnp.float32),
        # No grid: single invocation, whole problem (<10 KB) lives in VMEM.
        # block_shape == full array dims satisfies the (8,128) rule.
        in_specs=[
            pl.BlockSpec((B, H), lambda: (0, 0)),          # pooled_output
            pl.BlockSpec((H, out_dim), lambda: (0, 0)),    # weight (H, 2)
            pl.BlockSpec((1, out_dim), lambda: (0, 0)),    # bias   (1, 2)
        ],
        out_specs=pl.BlockSpec((B, out_dim), lambda: (0, 0)),
    )(pooled_output, w_t, bias2d)


def _reference(pooled_output, weight, bias):
    """Pure-JAX reference matching the PyTorch forward."""
    return pooled_output @ weight.T + bias


if __name__ == "__main__":
    key = jax.random.PRNGKey(0)
    k_x, k_w, k_b = jax.random.split(key, 3)

    pooled = jax.random.normal(k_x, (BATCH, HIDDEN), dtype=jnp.float32)

    # nn.Linear default init: U(-1/sqrt(fan_in), 1/sqrt(fan_in)); weight is (out, in).
    bound = 1.0 / math.sqrt(HIDDEN)
    weight = jax.random.uniform(k_w, (NUM_LABELS, HIDDEN), jnp.float32, -bound, bound)
    bias = jax.random.uniform(k_b, (NUM_LABELS,), jnp.float32, -bound, bound)

    # One-time parameter prep (analogous to model load), outside the forward.
    w_t, b2d = prepare_params(weight, bias)

    out = nsp_head(pooled, w_t, b2d)
    out = jax.block_until_ready(out)

    ref = _reference(pooled, weight, bias)
    assert out.shape == (BATCH, NUM_LABELS)
    assert jnp.max(jnp.abs(out - ref)) < 1e-3, "kernel mismatch vs reference"

    print("KERNEL_OK")
</pallas_src>

<mosaic_0001>
module attributes {stable_mosaic.version = 11 : i64} {
  func.func @nsp_head_kernel(%arg0: memref<2x32xf32, #tpu.memory_space<vmem>>, %arg1: memref<32x2xf32, #tpu.memory_space<vmem>>, %arg2: memref<1x2xf32, #tpu.memory_space<vmem>>, %arg3: memref<2x2xf32, #tpu.memory_space<vmem>>) attributes {dimension_semantics = [], scalar_prefetch = 0 : i64, scratch_operands = 0 : i64, tpu.core_type = #tpu.core_type<tc>} {
    %c0 = arith.constant 0 : index
    %c0_0 = arith.constant 0 : index
    %0 = vector.load %arg0[%c0, %c0_0] : memref<2x32xf32, #tpu.memory_space<vmem>>, vector<2x32xf32>
    %c0_1 = arith.constant 0 : index
    %c0_2 = arith.constant 0 : index
    %1 = vector.load %arg1[%c0_1, %c0_2] : memref<32x2xf32, #tpu.memory_space<vmem>>, vector<32x2xf32>
    %cst = arith.constant dense<0.000000e+00> : vector<2x2xf32>
    %2 = tpu.matmul %0, %1, %cst {dimension_numbers = #tpu.dot_dimension_numbers<[1], [0], [0], [1], [0, 0, 1, 1], [], []>} : vector<2x32xf32>, vector<32x2xf32>, vector<2x2xf32> -> vector<2x2xf32>
    %c0_3 = arith.constant 0 : index
    %c0_4 = arith.constant 0 : index
    %3 = vector.load %arg2[%c0_3, %c0_4] : memref<1x2xf32, #tpu.memory_space<vmem>>, vector<1x2xf32>
    %4 = vector.broadcast %3 : vector<1x2xf32> to vector<2x2xf32>
    %5 = arith.addf %2, %4 : vector<2x2xf32>
    %c0_5 = arith.constant 0 : index
    %c0_6 = arith.constant 0 : index
    %6 = vector.load %arg3[%c0_5, %c0_6] : memref<2x2xf32, #tpu.memory_space<vmem>>, vector<2x2xf32>
    tpu.vector_store %arg3[%c0_5, %c0_6], %5 {strides = array<i32>} : memref<2x2xf32, #tpu.memory_space<vmem>>, vector<2x2xf32>,
    return
  }
}

</mosaic_0001>

<llo_original>
// kernel: nsp_head.1
$region0: #{nsp_head.1}
  #allocation0 [shape = 'u32[]', space=smem, size = 0x4, offset = 0x4, fixed_abs, tag = 'smem constant byte address 0x4 - core index']
  #allocation1 [shape = 'u32[144,128]{1,0:T(1,128)}', space=vmem, size = 0x12000, scoped, tag = 'internal scratch']
  %s0 = inlined_call_operand.vmem [shape: f32[2,32], index: 0, kind: input, shape index: {}]
  %s1 = inlined_call_operand.vmem [shape: f32[32,2], index: 1, kind: input, shape index: {}]
  %s2 = inlined_call_operand.vmem [shape: f32[1,2], index: 2, kind: input, shape index: {}]
  %s3 = inlined_call_operand.hbm [shape: f32[2,2], index: 3, kind: output, shape index: {}]
  %s4 = sld [smem:[#allocation0]]
  $region22: #{nsp_head.1} parent=0
    _
  %s6 = ssub.s32 1, %s4
  %s7 = scalar_select 0, %s6, %s4
  $region1: #{nsp_head.1} parent=0
    #allocation2 [shape = 'u8[1024]{0}', space=vmem, size = 0x400, scoped, tag = 'output window, operand 0, single buffered']
    #allocation3 [shape = 's32[1]{0}', space=sflag, size = 0x4, scoped, tag = 'scoped memory for nsp_head.1']
    %8 = vsyncpa [#allocation3], 0
    // Predicated region
    $region2: #{nsp_head.1} parent=1 // pred_check
      _
    $region3: #{nsp_head.1} parent=1 // pred_check_branch
      %10 = sbr.rel (0) target = $region5
    $region4: #{nsp_head.1} parent=1 // pred_region
      _
    $region5: #{nsp_head.1} parent=1 // pred_fallthru
      _
    // Predicated region
    $region6: #{nsp_head.1} parent=1 // pred_check
      _
    $region7: #{nsp_head.1} parent=1 // pred_check_branch
      %12 = sbr.rel (0) target = $region9
    $region8: #{nsp_head.1} parent=1 // pred_region
      _
    $region9: #{nsp_head.1} parent=1 // pred_fallthru
      _
    // Predicated region
    $region10: #{nsp_head.1} parent=1 // pred_check
      _
    $region11: #{nsp_head.1} parent=1 // pred_check_branch
      %14 = sbr.rel (0) target = $region13
    $region12: #{nsp_head.1} parent=1 // pred_region
      _
    $region13: #{nsp_head.1} parent=1 // pred_fallthru
      _
    %v15 = vld [vmem:[%s0] sm:$0x3]
    %v16 = vld [vmem:[%s1] sm:$0xff]
    %v17 = vld [vmem:[%s1 + $0x8] sm:$0xff]
    %v18 = vld [vmem:[%s1 + $0x10] sm:$0xff]
    %v19 = vld [vmem:[%s1 + $0x18] sm:$0xff]
    %v20 = vld [vmem:[%s2] sm:$0x1]
    %v22 = vlaneseq
    %v23 = vshrl.u32 %v22, 7
    %v24 = vsub.s32 0, %v23
    %v25 = vrot.slane %v20, %v24
    %vm27 = vcmask 261120
    %v29 = vsel %vm27, %v15, 0
    %31 = vmatprep.subr.mxu0 0.0
    %32 = vmatpush1.msra.mxu0 %v16
    %33 = vmatprep.subr.mxu0 0.0
    %34 = vmatpush1.msra.mxu0 %v17
    %35 = vmatprep.subr.mxu0 0.0
    %36 = vmatpush1.msra.mxu0 %v18
    %37 = vmatprep.subr.mxu0 0.0
    %38 = vmatpush1.msra.mxu0 %v19
    %39 = vmatprep.subr.mxu0 0.0
    %40 = vmatpush1.msra.mxu0 0.0
    %41 = vmatprep.subr.mxu0 0.0
    %42 = vmatpush1.msra.mxu0 0.0
    %43 = vmatprep.subr.mxu0 0.0
    %44 = vmatpush1.msra.mxu0 0.0
    %45 = vmatprep.subr.mxu0 0.0
    %46 = vmatpush1.msra.mxu0 0.0
    %47 = vmatprep.subr.mxu0 0.0
    %48 = vmatpush1.msra.mxu0 0.0
    %49 = vmatprep.subr.mxu0 0.0
    %50 = vmatpush1.msra.mxu0 0.0
    %51 = vmatprep.subr.mxu0 0.0
    %52 = vmatpush1.msra.mxu0 0.0
    %53 = vmatprep.subr.mxu0 0.0
    %54 = vmatpush1.msra.mxu0 0.0
    %55 = vmatprep.subr.mxu0 0.0
    %56 = vmatpush1.msra.mxu0 0.0
    %57 = vmatprep.subr.mxu0 0.0
    %58 = vmatpush1.msra.mxu0 0.0
    %59 = vmatprep.subr.mxu0 0.0
    %60 = vmatpush1.msra.mxu0 0.0
    %61 = vmatprep.subr.mxu0 0.0
    %62 = vmatpush1.msra.mxu0 0.0
    %63 = vmatprep.subr.mxu0 0.0
    %64 = vmatpush1.msra.mxu0 0.0
    %65 = vmatprep.subr.mxu0 0.0
    %66 = vmatpush1.msra.mxu0 0.0
    %67 = vmatprep.subr.mxu0 0.0
    %68 = vmatpush1.msra.mxu0 0.0
    %69 = vmatprep.subr.mxu0 0.0
    %70 = vmatpush1.msra.mxu0 0.0
    %71 = vmatprep.subr.mxu0 0.0
    %72 = vmatpush1.msra.mxu0 0.0
    %73 = vmatprep.subr.mxu0 0.0
    %74 = vmatpush1.msra.mxu0 0.0
    %75 = vmatprep.subr.mxu0 0.0
    %76 = vmatpush1.msra.mxu0 0.0
    %77 = vmatprep.subr.mxu0 0.0
    %78 = vmatpush1.msra.mxu0 0.0
    %79 = vmatprep.subr.mxu0 0.0
    %80 = vmatpush1.msra.mxu0 0.0
    %81 = vmatprep.subr.mxu0 0.0
    %82 = vmatpush1.msra.mxu0 0.0
    %83 = vmatprep.subr.mxu0 0.0
    %84 = vmatpush1.msra.mxu0 0.0
    %85 = vmatprep.subr.mxu0 0.0
    %86 = vmatpush1.msra.mxu0 0.0
    %87 = vmatprep.subr.mxu0 0.0
    %88 = vmatpush1.msra.mxu0 0.0
    %89 = vmatprep.subr.mxu0 0.0
    %90 = vmatpush1.msra.mxu0 0.0
    %91 = vmatprep.subr.mxu0 0.0
    %92 = vmatpush1.msra.mxu0 0.0
    %93 = vmatprep.subr.mxu0 0.0
    %94 = vmatpush1.msra.mxu0 0.0
    %95 = vmatprep.mubr.f32.mxu0 0.0
    %96 = vmatmul.mubr.f32.gmra.mrb[0].mxu0 %v29
    %v97 = vpop.f32.mrb[0].mxu0
    %v98 = vadd.f32 %v25, %v97
    %v99 = vpop.f32.mrb[0].mxu0
    %100 = vdwg.mxu0
    %vm101 = vcmask 9216
    %102 = vst.msk [vmem:[#allocation2] sm:$0x3] %vm101, %v98
    // Predicated region
    $region14: #{nsp_head.1} parent=1 // pred_check
      _
    $region15: #{nsp_head.1} parent=1 // pred_check_branch
      %104 = sbr.rel (0) target = $region17
    $region16: #{nsp_head.1} parent=1 // pred_region
      %s106 = ssub.s32 32, 32
      %107 = vsyncadd [#allocation3], %s106
      %s109 = sshll.u32 [#allocation2], 4
      %s110 = int_to_ptr.vmem [resolvable:$true] %s109
      %112 = dma.vmem_to_hbm [thread:$0]  %s110, 32, %s3, [#allocation3]
    $region17: #{nsp_head.1} parent=1 // pred_fallthru
      _
    // Predicated region
    $region18: #{nsp_head.1} parent=1 // pred_check
      _
    $region19: #{nsp_head.1} parent=1 // pred_check_branch
      %114 = sbr.rel (0) target = $region21
    $region20: #{nsp_head.1} parent=1 // pred_region
      %115 = dma.done [#allocation3], 32
    $region21: #{nsp_head.1} parent=1 // pred_fallthru
      _
    %116 = vsyncpa [#allocation3], 1

</llo_original>
